<compile_context>
chip_gen: v7x
topology: tpu7x:2x2x1
jax: 0.10.0
libtpu: 0.0.40
codegen_flags: <defaults>
</compile_context>

<pallas_src>
import functools

import jax
import jax.numpy as jnp
from jax import lax
from jax.experimental import pallas as pl
from jax.experimental.pallas import tpu as pltpu

nFeats = 256
nOutChannels_0 = 2
nSkeleton_MPII = 15
nOutChannels_1 = nSkeleton_MPII + 1      # 16
nKeypoint_MPII = 16
nOutChannels_2 = nKeypoint_MPII + 1      # 17

BN_EPS = 1e-5
ACT_DTYPE = jnp.bfloat16                 # inter-layer activation dtype
_STATS_PALLAS_MIN_ROWS = 1024            # below this, BN stats are a cheap XLA reduce


def _ceil_to(x, m):
    return (x + m - 1) // m * m


def _row_tile(M):
    for t in (512, 256, 128, 8):
        if M % t == 0:
            return t
    return M


def _pick_tm(M):
    # Prefer >=2 row blocks so v7x's two TensorCores both get work; 512-row tiles get
    # much closer to the HBM roofline than 128/256.
    for t in (512, 256, 128):
        if M % t == 0 and M // t >= 2:
            return t, M
    if M <= 1024:
        return M, M                      # small / ragged M: single full-row block
    # TODO(synk): handle the ragged remainder with a masked final tile instead of a pad.
    Mp = _ceil_to(M, 128)
    return 128, Mp


# ----------------------------------------------------------------------------------
# Pallas kernel 1: fused  C = [BN+ReLU](A) @ W (+ bias) (+ ReLU)
# Weight (K,N), bias (1,N) and the optional BN scale/shift (1,K) use constant
# index_maps (VMEM-resident); only activation row tiles stream through the grid.
# MXU runs bf16, accumulation / prologue / epilogue are f32, output is bf16.
# ----------------------------------------------------------------------------------
@functools.lru_cache(maxsize=None)
def _matmul_call(Mp, K, N, tm, relu, has_bias, has_prologue, out_dtype):
    def kernel(*refs):
        i = 0
        a_ref, w_ref = refs[i], refs[i + 1]
        i += 2
        if has_prologue:
            s_ref, t_ref = refs[i], refs[i + 1]
            i += 2
        if has_bias:
            b_ref = refs[i]
            i += 1
        o_ref = refs[i]

        a = a_ref[...]
        if has_prologue:
            # fused BatchNorm-apply + ReLU on the streamed activation tile (f32 math)
            a = jnp.maximum(a.astype(jnp.float32) * s_ref[...] + t_ref[...], 0.0)
            a = a.astype(jnp.bfloat16)
        acc = jnp.dot(a, w_ref[...], preferred_element_type=jnp.float32)
        if has_bias:
            acc = acc + b_ref[...]
        if relu:
            acc = jnp.maximum(acc, 0.0)
        o_ref[...] = acc.astype(out_dtype)

    in_specs = [pl.BlockSpec((tm, K), lambda i: (i, 0)),      # streamed activation rows
                pl.BlockSpec((K, N), lambda i: (0, 0))]       # resident weights
    if has_prologue:
        in_specs += [pl.BlockSpec((1, K), lambda i: (0, 0)),
                     pl.BlockSpec((1, K), lambda i: (0, 0))]
    if has_bias:
        in_specs += [pl.BlockSpec((1, N), lambda i: (0, 0))]

    call = pl.pallas_call(
        kernel,
        out_shape=jax.ShapeDtypeStruct((Mp, N), out_dtype),
        grid=(Mp // tm,),
        in_specs=in_specs,
        out_specs=pl.BlockSpec((tm, N), lambda i: (i, 0)),
        compiler_params=pltpu.CompilerParams(dimension_semantics=("parallel",)),
    )
    return jax.jit(call)


def matmul_bias(a, w, b=None, relu=False, prologue=None, out_dtype=ACT_DTYPE):
    """a: (M,K), w: (K,N), optional b: (N,), optional prologue=(scale, shift) of (K,).
    Computes (relu of) [max(a*scale+shift, 0)] @ w (+ b) on the MXU."""
    M, K = a.shape
    N = w.shape[1]
    a = a.astype(jnp.bfloat16)
    w = w.astype(jnp.bfloat16)

    # Lane-dense outputs: pad N up to a multiple of 128 (head convs: 66/80/17/64 cols)
    Np = N if N % 128 == 0 else _ceil_to(N, 128)
    if Np != N:
        w = jnp.pad(w, ((0, 0), (0, Np - N)))
        if b is not None:
            b = jnp.pad(b, (0, Np - N))

    tm, Mp = _pick_tm(M)
    if Mp != M:
        a = jnp.pad(a, ((0, Mp - M), (0, 0)))

    args = [a, w]
    if prologue is not None:
        s, t = prologue
        args += [s.reshape(1, K).astype(jnp.float32),
                 t.reshape(1, K).astype(jnp.float32)]
    if b is not None:
        args.append(b.reshape(1, Np).astype(jnp.float32))

    out = _matmul_call(Mp, K, Np, tm, bool(relu), b is not None,
                       prologue is not None, out_dtype)(*args)
    if Mp != M:
        out = out[:M]
    if Np != N:
        out = out[:, :N]
    return out


# ----------------------------------------------------------------------------------
# Pallas kernel 2: direct 3x3 conv (stride 1, dilation 1, same padding).
# Manual double-buffered DMA of overlapping padded-input row windows (memory_space=ANY),
# 9 accumulating MXU dots into an f32 VMEM accumulator, bias epilogue, bf16 output.
# ----------------------------------------------------------------------------------
@functools.lru_cache(maxsize=None)
def _direct_conv3x3_call(N, H, W, Cin, Cout, tr, relu, out_dtype):
    Hp, Wp = H + 2, W + 2
    rw = tr + 2                         # input rows needed per output-row tile
    n_rt = H // tr
    total = N * n_rt

    def kernel(x_hbm, w_ref, b_ref, o_ref, buf, sem, acc):
        n = pl.program_id(0)
        r = pl.program_id(1)
        step = n * n_rt + r
        slot = step % 2

        def mk(s, sl):
            sn = s // n_rt
            srt = s - sn * n_rt
            row0 = sn * Hp + srt * tr
            return pltpu.make_async_copy(x_hbm.at[pl.ds(row0, rw)],
                                         buf.at[pl.ds(sl * rw, rw)],
                                         sem.at[sl])

        @pl.when(step == 0)
        def _():
            mk(step, slot).start()

        mk(step, slot).wait()

        @pl.when(step + 1 < total)
        def _():
            mk(step + 1, 1 - slot).start()

        for i in range(3):
            for j in range(3):
                a = buf[pl.ds(slot * rw + i, tr), j:j + W, :]
                a = a.reshape(tr * W, Cin)
                contrib = jnp.dot(a, w_ref[i * 3 + j],
                                  preferred_element_type=jnp.float32)
                if i == 0 and j == 0:
                    acc[...] = contrib
                else:
                    acc[...] += contrib

        y = acc[...] + b_ref[...]
        if relu:
            y = jnp.maximum(y, 0.0)
        o_ref[...] = y.reshape(1, tr, W, Cout).astype(out_dtype)

    call = pl.pallas_call(
        kernel,
        out_shape=jax.ShapeDtypeStruct((N, H, W, Cout), out_dtype),
        grid=(N, n_rt),
        in_specs=[pl.BlockSpec(memory_space=pl.ANY),                       # padded input, HBM
                  pl.BlockSpec((9, Cin, Cout), lambda n, r: (0, 0, 0)),    # resident taps
                  pl.BlockSpec((1, Cout), lambda n, r: (0, 0))],           # resident bias
        out_specs=pl.BlockSpec((1, tr, W, Cout), lambda n, r: (n, r, 0, 0)),
        scratch_shapes=[pltpu.VMEM((2 * rw, Wp, Cin), jnp.bfloat16),
                        pltpu.SemaphoreType.DMA((2,)),
                        pltpu.VMEM((tr * W, Cout), jnp.float32)],
        compiler_params=pltpu.CompilerParams(
            dimension_semantics=("arbitrary", "arbitrary")),   # manual DMA chain is sequential
    )
    return jax.jit(call)


def _direct_conv3x3(x, w, b, relu, out_dtype):
    N, H, W, Cin = x.shape
    Cout = w.shape[-1]
    # largest divisor of H whose row tile keeps the accumulator modest
    tr = 1
    for t in range(1, H + 1):
        if H % t == 0 and t * W <= 1024:
            tr = t
    xp = jnp.pad(x.astype(jnp.bfloat16), ((0, 0), (1, 1), (1, 1), (0, 0)))
    xr = xp.reshape(N * (H + 2), W + 2, Cin)
    wr = w.astype(jnp.bfloat16).reshape(9, Cin, Cout)
    bb = (b if b is not None else jnp.zeros((Cout,), jnp.float32))
    bb = bb.reshape(1, Cout).astype(jnp.float32)
    return _direct_conv3x3_call(N, H, W, Cin, Cout, tr, bool(relu), out_dtype)(xr, wr, bb)


# ----------------------------------------------------------------------------------
# Pallas kernels 3/4: BatchNorm stats reduction and tiled BN-apply (+residual[+BN]).
# ----------------------------------------------------------------------------------
@functools.lru_cache(maxsize=None)
def _bn_stats_call(M, C, tm, tc):
    def kernel(x_ref, s_ref, q_ref):
        @pl.when(pl.program_id(1) == 0)
        def _():
            s_ref[...] = jnp.zeros_like(s_ref)
            q_ref[...] = jnp.zeros_like(q_ref)
        x = x_ref[...].astype(jnp.float32)
        s_ref[...] += jnp.sum(x, axis=0, keepdims=True)
        q_ref[...] += jnp.sum(x * x, axis=0, keepdims=True)

    call = pl.pallas_call(
        kernel,
        out_shape=(jax.ShapeDtypeStruct((1, C), jnp.float32),
                   jax.ShapeDtypeStruct((1, C), jnp.float32)),
        grid=(C // tc, M // tm),
        in_specs=[pl.BlockSpec((tm, tc), lambda c, m: (m, c))],
        out_specs=(pl.BlockSpec((1, tc), lambda c, m: (0, c)),
                   pl.BlockSpec((1, tc), lambda c, m: (0, c))),
        compiler_params=pltpu.CompilerParams(
            dimension_semantics=("parallel", "arbitrary")),
    )
    return jax.jit(call)


@functools.lru_cache(maxsize=None)
def _bn_apply_call(M, C, tm, tc, relu, res_mode, out_dtype):
    # res_mode: 0 = none, 1 = plain residual add, 2 = residual with its own BN scale/shift
    def kernel(*refs):
        i = 0
        x_ref, s_ref, t_ref = refs[i], refs[i + 1], refs[i + 2]
        i += 3
        r_ref = rs_ref = rt_ref = None
        if res_mode >= 1:
            r_ref = refs[i]
            i += 1
        if res_mode == 2:
            rs_ref, rt_ref = refs[i], refs[i + 1]
            i += 2
        o_ref = refs[i]

        y = x_ref[...].astype(jnp.float32) * s_ref[...] + t_ref[...]
        if res_mode == 1:
            y = y + r_ref[...].astype(jnp.float32)
        elif res_mode == 2:
            y = y + (r_ref[...].astype(jnp.float32) * rs_ref[...] + rt_ref[...])
        if relu:
            y = jnp.maximum(y, 0.0)
        o_ref[...] = y.astype(out_dtype)

    in_specs = [pl.BlockSpec((tm, tc), lambda m, c: (m, c)),
                pl.BlockSpec((1, tc), lambda m, c: (0, c)),
                pl.BlockSpec((1, tc), lambda m, c: (0, c))]
    if res_mode >= 1:
        in_specs.append(pl.BlockSpec((tm, tc), lambda m, c: (m, c)))
    if res_mode == 2:
        in_specs += [pl.BlockSpec((1, tc), lambda m, c: (0, c)),
                     pl.BlockSpec((1, tc), lambda m, c: (0, c))]

    call = pl.pallas_call(
        kernel,
        out_shape=jax.ShapeDtypeStruct((M, C), out_dtype),
        grid=(M // tm, C // tc),
        in_specs=in_specs,
        out_specs=pl.BlockSpec((tm, tc), lambda m, c: (m, c)),
        compiler_params=pltpu.CompilerParams(
            dimension_semantics=("parallel", "parallel")),
    )
    return jax.jit(call)


def bn_scale_shift(x, gamma, beta):
    """Training-mode BatchNorm2d stats over (N,H,W): per-channel (scale, shift) in f32."""
    C = x.shape[-1]
    xf = x.reshape(-1, C)
    M = xf.shape[0]
    if M >= _STATS_PALLAS_MIN_ROWS:
        tc = 128 if C % 128 == 0 else C
        s, q = _bn_stats_call(M, C, _row_tile(M), tc)(xf)
        mean = s[0] * (1.0 / M)
        msq = q[0] * (1.0 / M)
    else:
        xf32 = xf.astype(jnp.float32)
        mean = jnp.mean(xf32, axis=0)
        msq = jnp.mean(xf32 * xf32, axis=0)
    var = jnp.maximum(msq - mean * mean, 0.0)     # clamp E[x^2]-mean^2 cancellation
    scale = gamma.astype(jnp.float32) * lax.rsqrt(var + BN_EPS)
    shift = beta.astype(jnp.float32) - mean * scale
    return scale, shift


def bn_apply(x, scale, shift, relu=False, residual=None, res_scale=None, res_shift=None):
    """y = x*scale+shift [+ residual or + residual*res_scale+res_shift] [relu], bf16 out."""
    shape = x.shape
    C = shape[-1]
    xf = x.reshape(-1, C)
    M = xf.shape[0]
    tc = 128 if C % 128 == 0 else C
    tm = _row_tile(M)
    res_mode = 0 if residual is None else (2 if res_scale is not None else 1)
    args = [xf,
            scale.reshape(1, C).astype(jnp.float32),
            shift.reshape(1, C).astype(jnp.float32)]
    if res_mode >= 1:
        args.append(residual.reshape(M, C))
    if res_mode == 2:
        args += [res_scale.reshape(1, C).astype(jnp.float32),
                 res_shift.reshape(1, C).astype(jnp.float32)]
    out = _bn_apply_call(M, C, tm, tc, bool(relu), res_mode, ACT_DTYPE)(*args)
    return out.reshape(shape)


# ----------------------------------------------------------------------------------
# Convolution dispatch: 1x1 -> matmul (optionally with fused BN+ReLU prologue);
# 3x3/s1/d1 -> direct Pallas conv; everything else -> bf16 im2col + matmul.
# ----------------------------------------------------------------------------------
@functools.partial(jax.jit, static_argnums=(1, 2, 3, 4, 5))
def _im2col(x, kh, kw, stride, padding, dilation):
    x = x.astype(jnp.bfloat16)
    xp = jnp.pad(x, ((0, 0), (padding, padding), (padding, padding), (0, 0)))
    Hp, Wp = x.shape[1] + 2 * padding, x.shape[2] + 2 * padding
    hout = (Hp - (dilation * (kh - 1) + 1)) // stride + 1
    wout = (Wp - (dilation * (kw - 1) + 1)) // stride + 1
    cols = []
    for i in range(kh):
        for j in range(kw):
            sl = xp[:, i * dilation:i * dilation + (hout - 1) * stride + 1:stride,
                       j * dilation:j * dilation + (wout - 1) * stride + 1:stride, :]
            cols.append(sl)
    patches = jnp.concatenate(cols, axis=-1)
    return patches.reshape(-1, kh * kw * x.shape[3])


def conv2d(x, w, b=None, stride=1, padding=0, dilation=1, relu=False,
           prologue=None, out_dtype=ACT_DTYPE):
    """x: (N,H,W,Cin). w: (KH,KW,Cin,Cout). Returns (N,Hout,Wout,Cout) in out_dtype."""
    N, H, W, Cin = x.shape
    KH, KW, _, Cout = w.shape
    if KH == 1 and KW == 1 and padding == 0 and dilation == 1:
        xs = x if stride == 1 else x[:, ::stride, ::stride, :]
        hout, wout = xs.shape[1], xs.shape[2]
        y = matmul_bias(xs.reshape(-1, Cin), w.reshape(Cin, Cout), b,
                        relu=relu, prologue=prologue, out_dtype=out_dtype)
        return y.reshape(N, hout, wout, Cout)

    assert prologue is None, "BN prologue fusion is only used for unpadded 1x1 convs"
    hout = (H + 2 * padding - (dilation * (KH - 1) + 1)) // stride + 1
    wout = (W + 2 * padding - (dilation * (KW - 1) + 1)) // stride + 1
    if (KH == 3 and KW == 3 and stride == 1 and dilation == 1 and padding == 1
            and H % 8 == 0 and W % 8 == 0 and Cin % 8 == 0):
        return _direct_conv3x3(x, w, b, relu, out_dtype)

    patches = _im2col(x, KH, KW, stride, padding, dilation)
    y = matmul_bias(patches, w.reshape(KH * KW * Cin, Cout), b,
                    relu=relu, out_dtype=out_dtype)
    return y.reshape(N, hout, wout, Cout)


@jax.jit
def nearest_up2(x):
    # F.interpolate(scale_factor=2, mode='nearest') as one fused broadcast+reshape
    N, H, W, C = x.shape
    y = jnp.broadcast_to(x[:, :, None, :, None, :], (N, H, 2, W, 2, C))
    return y.reshape(N, 2 * H, 2 * W, C)


# ----------------------------------------------------------------------------------
# Deterministic parameter construction
# ----------------------------------------------------------------------------------
def _init_conv(key, kh, kw, cin, cout, bias=True):
    std = (2.0 / (kh * kw * cin)) ** 0.5
    w = jax.random.normal(key, (kh, kw, cin, cout), jnp.float32) * std
    b = jnp.zeros((cout,), jnp.float32) if bias else None
    return {"w": w, "b": b}


def _init_bn(c):
    return {"g": jnp.ones((c,), jnp.float32), "b": jnp.zeros((c,), jnp.float32)}


def make_residual_block(keys, num_in, num_out, stride=1):
    half = num_out // 2
    return {
        "num_in": num_in, "num_out": num_out, "stride": stride,
        "bn1": _init_bn(num_in),
        "conv1": _init_conv(next(keys), 1, 1, num_in, half),
        "bn2": _init_bn(half),
        "conv2": _init_conv(next(keys), 3, 3, half, half),
        "bn3": _init_bn(half),
        "conv3": _init_conv(next(keys), 1, 1, half, num_out),
        "bn4": _init_bn(num_out),
        "ds_conv": _init_conv(next(keys), 1, 1, num_in, num_out, bias=False),
        "ds_bn": _init_bn(num_out),
    }


def apply_residual_block(p, x):
    num_in, num_out, stride = p["num_in"], p["num_out"], p["stride"]
    residual = x
    # bn1 + relu fused as the prologue of the 1x1 conv1 matmul
    s1, t1 = bn_scale_shift(x, p["bn1"]["g"], p["bn1"]["b"])
    h = conv2d(x, p["conv1"]["w"], p["conv1"]["b"], prologue=(s1, t1))
    # bn2 + relu as a standalone apply kernel (conv2 is a zero-padded 3x3)
    s2, t2 = bn_scale_shift(h, p["bn2"]["g"], p["bn2"]["b"])
    h = bn_apply(h, s2, t2, relu=True)
    h = conv2d(h, p["conv2"]["w"], p["conv2"]["b"], stride=stride, padding=1)
    # bn3 + relu fused as the prologue of the 1x1 conv3 matmul
    s3, t3 = bn_scale_shift(h, p["bn3"]["g"], p["bn3"]["b"])
    h = conv2d(h, p["conv3"]["w"], p["conv3"]["b"], prologue=(s3, t3))
    # Exact PyTorch condition `stride != 1 | numIn != numOut` parses (| binds tighter,
    # then chained comparison) as: (stride != (1|numIn)) and ((1|numIn) != numOut)
    use_ds = (stride != (1 | num_in)) and ((1 | num_in) != num_out)
    if use_ds:
        residual = conv2d(residual, p["ds_conv"]["w"], None, stride=stride)
        res_s, res_t = bn_scale_shift(residual, p["ds_bn"]["g"], p["ds_bn"]["b"])
    else:
        res_s, res_t = None, None
    s4, t4 = bn_scale_shift(h, p["bn4"]["g"], p["bn4"]["b"])
    # bn4, downsample-branch BN and the residual add all fused in one Pallas kernel
    return bn_apply(h, s4, t4, relu=False, residual=residual,
                    res_scale=res_s, res_shift=res_t)


def make_aspp_module(keys, inplanes, planes, k, padding, dilation):
    return {"conv": _init_conv(next(keys), k, k, inplanes, planes, bias=False),
            "bn": _init_bn(planes), "padding": padding, "dilation": dilation}


def apply_aspp_module(p, x):
    h = conv2d(x, p["conv"]["w"], None, stride=1,
               padding=p["padding"], dilation=p["dilation"])
    s, t = bn_scale_shift(h, p["bn"]["g"], p["bn"]["b"])
    return bn_apply(h, s, t, relu=True)


def make_aspp_block(keys):
    inplanes, dil = 256, [1, 6, 12, 18]
    return {
        "aspp1": make_aspp_module(keys, inplanes, 256, 1, 0, dil[0]),
        "aspp2": make_aspp_module(keys, inplanes, 256, 3, dil[1], dil[1]),
        "aspp3": make_aspp_module(keys, inplanes, 256, 3, dil[2], dil[2]),
        "aspp4": make_aspp_module(keys, inplanes, 256, 3, dil[3], dil[3]),
        "gap_conv": _init_conv(next(keys), 1, 1, inplanes, 256, bias=False),
        "gap_bn": _init_bn(256),
        "conv1": _init_conv(next(keys), 1, 1, 1280, 256, bias=False),
        "bn1": _init_bn(256),
    }


def apply_aspp_block(p, x):
    x1 = apply_aspp_module(p["aspp1"], x)
    x2 = apply_aspp_module(p["aspp2"], x)
    x3 = apply_aspp_module(p["aspp3"], x)
    x4 = apply_aspp_module(p["aspp4"], x)
    x5 = jnp.mean(x.astype(jnp.float32), axis=(1, 2), keepdims=True)  # AdaptiveAvgPool2d
    x5 = conv2d(x5, p["gap_conv"]["w"], None)
    s5, t5 = bn_scale_shift(x5, p["gap_bn"]["g"], p["gap_bn"]["b"])
    x5 = bn_apply(x5, s5, t5, relu=True)
    # bilinear(align_corners=True) upsample from a 1x1 source is exactly a broadcast
    x5 = jnp.broadcast_to(x5, (x5.shape[0], x4.shape[1], x4.shape[2], x5.shape[3]))
    h = jnp.concatenate([x1, x2, x3, x4, x5], axis=-1)          # 1280 channels
    h = conv2d(h, p["conv1"]["w"], None)
    s, t = bn_scale_shift(h, p["bn1"]["g"], p["bn1"]["b"])
    return bn_apply(h, s, t, relu=True)


def make_hourglass(keys, f):
    return {
        "downsample1": make_residual_block(keys, f, f, 2),
        "downsample2": make_residual_block(keys, f, f, 2),
        "downsample3": make_residual_block(keys, f, f, 2),
        "downsample4": make_residual_block(keys, f, f, 2),
        "residual1": make_residual_block(keys, f, f // 2),
        "residual2": make_residual_block(keys, f, f // 2),
        "residual3": make_residual_block(keys, f, f // 2),
        "residual4": make_residual_block(keys, f, f // 2),
        "upsample1": make_residual_block(keys, f, f // 2),
        "upsample2": make_residual_block(keys, f, f // 2),
        "upsample3": make_residual_block(keys, f, f // 2),
        "upsample4": make_residual_block(keys, f, f // 2),
        "aspp": make_aspp_block(keys),
    }


def apply_hourglass(p, x):
    up1 = apply_residual_block(p["residual1"], x)
    down1 = apply_residual_block(p["downsample1"], x)
    up2 = apply_residual_block(p["residual2"], down1)
    down2 = apply_residual_block(p["downsample2"], down1)
    up3 = apply_residual_block(p["residual3"], down2)
    down3 = apply_residual_block(p["downsample3"], down2)
    up4 = apply_residual_block(p["residual4"], down3)
    down4 = apply_residual_block(p["downsample4"], down3)
    out = apply_aspp_block(p["aspp"], down4)
    out = nearest_up2(out)
    out = apply_residual_block(p["upsample4"], out)
    out = jnp.concatenate([out, up4], axis=-1)
    out = nearest_up2(out)
    out = apply_residual_block(p["upsample3"], out)
    out = jnp.concatenate([out, up3], axis=-1)
    out = nearest_up2(out)
    out = apply_residual_block(p["upsample2"], out)
    out = jnp.concatenate([out, up2], axis=-1)
    out = nearest_up2(out)
    out = apply_residual_block(p["upsample1"], out)
    out = jnp.concatenate([out, up1], axis=-1)
    return out


def make_model_params(seed=1):
    keys = iter(jax.random.split(jax.random.PRNGKey(seed), 1024))
    return {
        "pre_conv": _init_conv(next(keys), 7, 7, 3, 64, bias=True),
        "pre_rb1": make_residual_block(keys, 64, 128, 2),
        "pre_rb2": make_residual_block(keys, 128, 128),
        "pre_rb3": make_residual_block(keys, 128, nFeats),
        "stage1": make_hourglass(keys, nFeats),
        "stage1_out": _init_conv(next(keys), 1, 1, nFeats, nOutChannels_0, bias=False),
        "stage1_return": _init_conv(next(keys), 1, 1, nOutChannels_0, nFeats // 2, bias=False),
        "stage1_return_2": _init_conv(next(keys), 1, 1, nFeats, nFeats // 4, bias=False),
        "stage1_down_feature": _init_conv(next(keys), 1, 1, nFeats, nFeats // 4, bias=False),
        "stage2": make_hourglass(keys, nFeats),
        "stage2_out": _init_conv(next(keys), 1, 1, nFeats, nOutChannels_1, bias=False),
        "stage2_return": _init_conv(next(keys), 1, 1, nOutChannels_1, nFeats // 2, bias=False),
        "stage2_return_2": _init_conv(next(keys), 1, 1, nFeats, nFeats // 4, bias=False),
        "stage2_down_feature": _init_conv(next(keys), 1, 1, nFeats, nFeats // 4, bias=False),
        "stage3": make_hourglass(keys, nFeats),
        "stage3_out": _init_conv(next(keys), 1, 1, nFeats, nOutChannels_2, bias=False),
    }


def creat_model_forward(p, x_nchw):
    # Input NCHW (PyTorch convention) -> internal NHWC bf16 -> outputs NCHW f32.
    x = jnp.transpose(x_nchw.astype(jnp.float32), (0, 2, 3, 1))
    h = conv2d(x, p["pre_conv"]["w"], p["pre_conv"]["b"], stride=2, padding=3, relu=True)
    h = apply_residual_block(p["pre_rb1"], h)
    h = apply_residual_block(p["pre_rb2"], h)
    inter = apply_residual_block(p["pre_rb3"], h)

    outs = []
    # stage 1  (stage1_out and stage1_return_2 share input `ll` -> one fused matmul,
    #           padded to 128 output lanes for dense stores)
    ll = apply_hourglass(p["stage1"], inter)
    w_heads = jnp.concatenate([p["stage1_out"]["w"], p["stage1_return_2"]["w"]], axis=-1)
    y = conv2d(ll, w_heads, None)
    tmp = y[..., :nOutChannels_0]
    ll_ = y[..., nOutChannels_0:]
    outs.append(tmp)
    tmp = conv2d(tmp, p["stage1_return"]["w"], None)
    inter = conv2d(inter, p["stage1_down_feature"]["w"], None)
    inter = jnp.concatenate([tmp, ll_, inter], axis=-1)
    # stage 2
    ll = apply_hourglass(p["stage2"], inter)
    w_heads = jnp.concatenate([p["stage2_out"]["w"], p["stage2_return_2"]["w"]], axis=-1)
    y = conv2d(ll, w_heads, None)
    tmp = y[..., :nOutChannels_1]
    ll_ = y[..., nOutChannels_1:]
    outs.append(tmp)
    tmp = conv2d(tmp, p["stage2_return"]["w"], None)
    inter = conv2d(inter, p["stage2_down_feature"]["w"], None)
    inter = jnp.concatenate([tmp, ll_, inter], axis=-1)
    # stage 3
    ll = apply_hourglass(p["stage3"], inter)
    tmp = conv2d(ll, p["stage3_out"]["w"], None)
    outs.append(tmp)

    return [jnp.transpose(o, (0, 3, 1, 2)).astype(jnp.float32) for o in outs]


if __name__ == "__main__":
    kq = jax.random.split(jax.random.PRNGKey(0), 12)

    # --- matmul kernel: fused BN+ReLU prologue + bias -------------------------------
    a = jax.random.normal(kq[1], (256, 128), jnp.float32)
    wt = jax.random.normal(kq[2], (128, 256), jnp.float32) * 0.05
    bb = jax.random.normal(kq[3], (256,), jnp.float32) * 0.1
    sc = jax.random.uniform(kq[4], (128,), jnp.float32) + 0.5
    sh = jax.random.normal(kq[5], (128,), jnp.float32) * 0.1
    got = matmul_bias(a, wt, bb, relu=False, prologue=(sc, sh)).astype(jnp.float32)
    ab = a.astype(jnp.bfloat16).astype(jnp.float32)
    af = jnp.maximum(ab * sc + sh, 0.0).astype(jnp.bfloat16)
    ref = jnp.dot(af, wt.astype(jnp.bfloat16), preferred_element_type=jnp.float32) + bb
    assert jnp.allclose(got, ref, rtol=3e-2, atol=3e-2)

    # --- matmul kernel: lane-dense N padding path (N=66 -> 128) ----------------------
    a2 = jax.random.normal(kq[6], (512, 256), jnp.float32)
    w2 = jax.random.normal(kq[7], (256, 66), jnp.float32) * 0.05
    got2 = matmul_bias(a2, w2, None).astype(jnp.float32)
    ref2 = jnp.dot(a2.astype(jnp.bfloat16), w2.astype(jnp.bfloat16),
                   preferred_element_type=jnp.float32)
    assert jnp.allclose(got2, ref2, rtol=3e-2, atol=3e-2)

    # --- direct 3x3 conv kernel vs XLA reference -------------------------------------
    xc = jax.random.normal(kq[8], (2, 16, 16, 128), jnp.float32)
    wc = jax.random.normal(kq[9], (3, 3, 128, 128), jnp.float32) * 0.05
    bc = jax.random.normal(kq[10], (128,), jnp.float32) * 0.1
    got3 = conv2d(xc, wc, bc, stride=1, padding=1).astype(jnp.float32)
    ref3 = lax.conv_general_dilated(
        xc.astype(jnp.bfloat16), wc.astype(jnp.bfloat16), (1, 1), "SAME",
        dimension_numbers=("NHWC", "HWIO", "NHWC"),
        preferred_element_type=jnp.float32) + bc
    assert jnp.allclose(got3, ref3, rtol=5e-2, atol=5e-2)

    # --- BN stats (Pallas reduction) + apply kernel with fused residual-BN -----------
    xb = jax.random.normal(kq[11], (4, 32, 32, 128), jnp.float32)
    rb = jax.random.normal(kq[0], (4, 32, 32, 128), jnp.float32)
    g1 = jnp.linspace(0.5, 1.5, 128, dtype=jnp.float32)
    b1 = jnp.linspace(-1.0, 1.0, 128, dtype=jnp.float32)
    s_a, t_a = bn_scale_shift(xb, g1, b1)
    s_b, t_b = bn_scale_shift(rb, g1, b1)
    got4 = bn_apply(xb, s_a, t_a, relu=False, residual=rb,
                    res_scale=s_b, res_shift=t_b).astype(jnp.float32)
    ref4 = (xb * s_a + t_a) + (rb * s_b + t_b)
    assert jnp.allclose(got4, ref4, rtol=3e-2, atol=3e-2)

    # --- full model forward -----------------------------------------------------------
    params = make_model_params(seed=1)
    # Smallest spatial size compatible with 4x hourglass downsampling after the /4 stem.
    x = jax.random.normal(jax.random.PRNGKey(0), (2, 3, 64, 64), jnp.float32)
    outs = creat_model_forward(params, x)
    outs = [jax.block_until_ready(o) for o in outs]
    assert outs[0].shape == (2, nOutChannels_0, 16, 16)
    assert outs[1].shape == (2, nOutChannels_1, 16, 16)
    assert outs[2].shape == (2, nOutChannels_2, 16, 16)
    assert all(bool(jnp.all(jnp.isfinite(o))) for o in outs)
    print("KERNEL_OK")
</pallas_src>

<mosaic_0001>
module attributes {stable_mosaic.version = 11 : i64} {
  func.func @kernel(%arg0: i32, %arg1: memref<128x128xbf16, #tpu.memory_space<vmem>>, %arg2: memref<128x256xbf16, #tpu.memory_space<vmem>>, %arg3: memref<1x128xf32, #tpu.memory_space<vmem>>, %arg4: memref<1x128xf32, #tpu.memory_space<vmem>>, %arg5: memref<1x256xf32, #tpu.memory_space<vmem>>, %arg6: memref<128x256xbf16, #tpu.memory_space<vmem>>) attributes {dimension_semantics = [#tpu.dimension_semantics<parallel>], iteration_bounds = array<i64: 2>, scalar_prefetch = 0 : i64, scratch_operands = 0 : i64, tpu.core_type = #tpu.core_type<tc>, window_params = [{transform_indices = @transform_0, window_bounds = array<i64: 128, 128>}, {pipeline_mode = #tpu.pipeline_mode<synchronous>, transform_indices = @transform_1, window_bounds = array<i64: 128, 256>}, {pipeline_mode = #tpu.pipeline_mode<synchronous>, transform_indices = @transform_2, window_bounds = array<i64: 1, 128>}, {pipeline_mode = #tpu.pipeline_mode<synchronous>, transform_indices = @transform_3, window_bounds = array<i64: 1, 128>}, {pipeline_mode = #tpu.pipeline_mode<synchronous>, transform_indices = @transform_4, window_bounds = array<i64: 1, 256>}, {transform_indices = @transform_5, window_bounds = array<i64: 128, 256>}]} {
    %c0 = arith.constant 0 : index
    %c0_0 = arith.constant 0 : index
    %0 = vector.load %arg1[%c0, %c0_0] : memref<128x128xbf16, #tpu.memory_space<vmem>>, vector<128x128xbf16>
    %1 = arith.extf %0 : vector<128x128xbf16> to vector<128x128xf32>
    %c0_1 = arith.constant 0 : index
    %c0_2 = arith.constant 0 : index
    %2 = vector.load %arg3[%c0_1, %c0_2] : memref<1x128xf32, #tpu.memory_space<vmem>>, vector<1x128xf32>
    %3 = vector.broadcast %2 : vector<1x128xf32> to vector<128x128xf32>
    %4 = arith.mulf %1, %3 : vector<128x128xf32>
    %c0_3 = arith.constant 0 : index
    %c0_4 = arith.constant 0 : index
    %5 = vector.load %arg4[%c0_3, %c0_4] : memref<1x128xf32, #tpu.memory_space<vmem>>, vector<1x128xf32>
    %6 = vector.broadcast %5 : vector<1x128xf32> to vector<128x128xf32>
    %7 = arith.addf %4, %6 : vector<128x128xf32>
    %cst = arith.constant 0.000000e+00 : f32
    %8 = vector.broadcast %cst : f32 to vector<128x128xf32>
    %9 = arith.maximumf %7, %8 : vector<128x128xf32>
    %10 = arith.truncf %9 : vector<128x128xf32> to vector<128x128xbf16>
    %c0_5 = arith.constant 0 : index
    %c0_6 = arith.constant 0 : index
    %11 = vector.load %arg2[%c0_5, %c0_6] : memref<128x256xbf16, #tpu.memory_space<vmem>>, vector<128x256xbf16>
    %cst_7 = arith.constant dense<0.000000e+00> : vector<128x256xf32>
    %12 = tpu.matmul %10, %11, %cst_7 {dimension_numbers = #tpu.dot_dimension_numbers<[1], [0], [0], [1], [0, 0, 1, 1], [], []>} : vector<128x128xbf16>, vector<128x256xbf16>, vector<128x256xf32> -> vector<128x256xf32>
    %c0_8 = arith.constant 0 : index
    %c0_9 = arith.constant 0 : index
    %13 = vector.load %arg5[%c0_8, %c0_9] : memref<1x256xf32, #tpu.memory_space<vmem>>, vector<1x256xf32>
    %14 = vector.broadcast %13 : vector<1x256xf32> to vector<128x256xf32>
    %15 = arith.addf %12, %14 : vector<128x256xf32>
    %16 = arith.truncf %15 : vector<128x256xf32> to vector<128x256xbf16>
    %c0_10 = arith.constant 0 : index
    %c0_11 = arith.constant 0 : index
    %17 = vector.load %arg6[%c0_10, %c0_11] : memref<128x256xbf16, #tpu.memory_space<vmem>>, vector<128x256xbf16>
    tpu.vector_store %arg6[%c0_10, %c0_11], %16 {strides = array<i32>} : memref<128x256xbf16, #tpu.memory_space<vmem>>, vector<128x256xbf16>,
    return
  }
  func.func @transform_0(%arg0: i32) -> (i32, i32) {
    %c0_i32 = arith.constant 0 : i32
    %c0_i32_0 = arith.constant 0 : i32
    return %arg0, %c0_i32 : i32, i32
  }
  func.func @transform_1(%arg0: i32) -> (i32, i32) {
    %c0_i32 = arith.constant 0 : i32
    %c0_i32_0 = arith.constant 0 : i32
    %c0_i32_1 = arith.constant 0 : i32
    return %c0_i32, %c0_i32_0 : i32, i32
  }
  func.func @transform_2(%arg0: i32) -> (i32, i32) {
    %c0_i32 = arith.constant 0 : i32
    %c0_i32_0 = arith.constant 0 : i32
    %c0_i32_1 = arith.constant 0 : i32
    return %c0_i32, %c0_i32_0 : i32, i32
  }
  func.func @transform_3(%arg0: i32) -> (i32, i32) {
    %c0_i32 = arith.constant 0 : i32
    %c0_i32_0 = arith.constant 0 : i32
    %c0_i32_1 = arith.constant 0 : i32
    return %c0_i32, %c0_i32_0 : i32, i32
  }
  func.func @transform_4(%arg0: i32) -> (i32, i32) {
    %c0_i32 = arith.constant 0 : i32
    %c0_i32_0 = arith.constant 0 : i32
    %c0_i32_1 = arith.constant 0 : i32
    return %c0_i32, %c0_i32_0 : i32, i32
  }
  func.func @transform_5(%arg0: i32) -> (i32, i32) {
    %c0_i32 = arith.constant 0 : i32
    %c0_i32_0 = arith.constant 0 : i32
    return %arg0, %c0_i32 : i32, i32
  }
}

</mosaic_0001>

<llo_original>
// kernel: tpu_custom_call.1
$region0: #{tpu_custom_call.1}
  #allocation0 [shape = 'u32[]', space=smem, size = 0x4, offset = 0x4, fixed_abs, tag = 'smem constant byte address 0x4 - core index']
  #allocation1 [shape = 'u32[144,128]{1,0:T(1,128)}', space=vmem, size = 0x12000, scoped, tag = 'internal scratch']
  %s0 = inlined_call_operand.hbm [shape: bf16[256,128], index: 0, kind: input, shape index: {}]
  %s1 = inlined_call_operand.hbm [shape: bf16[128,256], index: 1, kind: input, shape index: {}]
  %s2 = inlined_call_operand.vmem [shape: f32[1,128], index: 2, kind: input, shape index: {}]
  %s3 = inlined_call_operand.vmem [shape: f32[1,128], index: 3, kind: input, shape index: {}]
  %s4 = inlined_call_operand.vmem [shape: f32[1,256], index: 4, kind: input, shape index: {}]
  %s5 = inlined_call_operand.hbm [shape: bf16[256,256], index: 5, kind: output, shape index: {}]
  %s6 = sld [smem:[#allocation0]]
  $region61: #{tpu_custom_call.1} parent=0
    _
  %s8 = ssub.s32 1, %s6
  %s9 = scalar_select 0, %s8, %s6
  $region1: #{tpu_custom_call.1} parent=0
    #allocation2 [shape = 'u8[65536]{0}', space=vmem, size = 0x10000, scoped, tag = 'input window, operand 0']
    #allocation3 [shape = 's32[2]{0}', space=sflag, size = 0x8, scoped, tag = 'scoped memory for tpu_custom_call.1']
    #allocation4 [shape = 's32[2]{0}', space=sflag, size = 0x8, scoped, tag = 'scoped memory for tpu_custom_call.1']
    #allocation5 [shape = 'u8[65536]{0}', space=vmem, size = 0x10000, scoped, tag = 'input window, operand 1, single buffered']
    #allocation6 [shape = 's32[1]{0}', space=sflag, size = 0x4, scoped, tag = 'scoped memory for tpu_custom_call.1']
    #allocation7 [shape = 'u8[131072]{0}', space=vmem, size = 0x20000, scoped, tag = 'output window, operand 0']
    %10 = vsyncpa [#allocation3], 0
    %s11 = scalar_lea.sflag [#allocation3], 1
    %12 = vsyncpa %s11, 0
    %13 = vsyncpa [#allocation6], 0
    %14 = vsyncpa [#allocation4], 0
    %s15 = scalar_lea.sflag [#allocation4], 1
    %16 = vsyncpa %s15, 0
    loop: start=0, step=1, limit=4
    $region2: #{tpu_custom_call.1} parent=1 // loop_pre_header
      _
    $region3: #{tpu_custom_call.1} parent=1 // loop_header
      %s18 = sphi 0, %s22
      %p19 = scmp.ge.s32.totalorder %s18, 4
      %s28 = sphi 0, %s30
      %s31 = sphi 0, %s28
      %s32 = sphi 0, %s31
      %s48 = sphi 0, %s32
      %s52 = sphi 0, %s52
      %s54 = sphi 0, %s52
      %s55 = sphi 0, %s54
      %s69 = sphi 0, %s55
      %s73 = sphi 0, %s73
      %s75 = sphi 0, %s73
      %s76 = sphi 0, %s75
      %s90 = sphi 0, %s76
      %s94 = sphi 0, %s94
      %s96 = sphi 0, %s94
      %s97 = sphi 0, %s96
      %s111 = sphi 0, %s97
      %s115 = sphi 0, %s115
      %s117 = sphi 0, %s115
      %s118 = sphi 0, %s117
      %s132 = sphi 0, %s118
      %s138 = sphi 0, %s140
      %s141 = sphi 0, %s138
      %s142 = sphi 0, %s141
      %s158 = sphi 0, %s142
    $region4: #{tpu_custom_call.1} parent=1 // loop_header_branch
      %21 = sbr.rel (%p19) target = $region8
    $region5: #{tpu_custom_call.1} parent=1 // loop_body
      %s23 = ssub.s32 %s18, 1
      %s24 = ssub.s32 %s18, 2
      %s25 = sadd.s32 %s18, 1
      %s26 = ssub.s32 %s18, %s25
      %p27 = scmp.eq.s32.totalorder %s26, 0
      %s29 = sadd.s32 %s28, 1
      %s30 = scalar_select %p27, %s28, %s29
      %p33 = pneg %p27
      %p34 = scmp.eq.s32.totalorder %s18, 1
      %p35 = por %p33, %p34
      %p36 = scmp.ne.s32.totalorder %s28, %s31
      %p37 = scmp.eq.s32.totalorder %s18, 0
      %p38 = por %p36, %p37
      %p39 = scmp.ne.s32.totalorder %s28, %s31
      %p40 = scmp.eq.s32.totalorder %s23, 1
      %p41 = por %p39, %p40
      %p42 = scmp.ne.s32.totalorder %s31, %s32
      %p43 = scmp.eq.s32.totalorder %s23, 0
      %p44 = por %p42, %p43
      %p45 = scmp.ne.s32.totalorder %s31, %s32
      %p46 = scmp.eq.s32.totalorder %s24, 1
      %p47 = por %p45, %p46
      %p49 = scmp.ne.s32.totalorder %s32, %s48
      %p50 = scmp.eq.s32.totalorder %s24, 0
      %p51 = por %p49, %p50
      %s53 = sadd.s32 %s52, 1
      %p56 = scmp.eq.s32.totalorder %s18, 1
      %p57 = scmp.ne.s32.totalorder %s52, %s54
      %p58 = scmp.eq.s32.totalorder %s18, 0
      %p59 = por %p57, %p58
      %p60 = scmp.ne.s32.totalorder %s52, %s54
      %p61 = scmp.eq.s32.totalorder %s23, 1
      %p62 = por %p60, %p61
      %p63 = scmp.ne.s32.totalorder %s54, %s55
      %p64 = scmp.eq.s32.totalorder %s23, 0
      %p65 = por %p63, %p64
      %p66 = scmp.ne.s32.totalorder %s54, %s55
      %p67 = scmp.eq.s32.totalorder %s24, 1
      %p68 = por %p66, %p67
      %p70 = scmp.ne.s32.totalorder %s55, %s69
      %p71 = scmp.eq.s32.totalorder %s24, 0
      %p72 = por %p70, %p71
      %s74 = sadd.s32 %s73, 1
      %p77 = scmp.eq.s32.totalorder %s18, 1
      %p78 = scmp.ne.s32.totalorder %s73, %s75
      %p79 = scmp.eq.s32.totalorder %s18, 0
      %p80 = por %p78, %p79
      %p81 = scmp.ne.s32.totalorder %s73, %s75
      %p82 = scmp.eq.s32.totalorder %s23, 1
      %p83 = por %p81, %p82
      %p84 = scmp.ne.s32.totalorder %s75, %s76
      %p85 = scmp.eq.s32.totalorder %s23, 0
      %p86 = por %p84, %p85
      %p87 = scmp.ne.s32.totalorder %s75, %s76
      %p88 = scmp.eq.s32.totalorder %s24, 1
      %p89 = por %p87, %p88
      %p91 = scmp.ne.s32.totalorder %s76, %s90
      %p92 = scmp.eq.s32.totalorder %s24, 0
      %p93 = por %p91, %p92
      %s95 = sadd.s32 %s94, 1
      %p98 = scmp.eq.s32.totalorder %s18, 1
      %p99 = scmp.ne.s32.totalorder %s94, %s96
      %p100 = scmp.eq.s32.totalorder %s18, 0
      %p101 = por %p99, %p100
      %p102 = scmp.ne.s32.totalorder %s94, %s96
      %p103 = scmp.eq.s32.totalorder %s23, 1
      %p104 = por %p102, %p103
      %p105 = scmp.ne.s32.totalorder %s96, %s97
      %p106 = scmp.eq.s32.totalorder %s23, 0
      %p107 = por %p105, %p106
      %p108 = scmp.ne.s32.totalorder %s96, %s97
      %p109 = scmp.eq.s32.totalorder %s24, 1
      %p110 = por %p108, %p109
      %p112 = scmp.ne.s32.totalorder %s97, %s111
      %p113 = scmp.eq.s32.totalorder %s24, 0
      %p114 = por %p112, %p113
      %s116 = sadd.s32 %s115, 1
      %p119 = scmp.eq.s32.totalorder %s18, 1
      %p120 = scmp.ne.s32.totalorder %s115, %s117
      %p121 = scmp.eq.s32.totalorder %s18, 0
      %p122 = por %p120, %p121
      %p123 = scmp.ne.s32.totalorder %s115, %s117
      %p124 = scmp.eq.s32.totalorder %s23, 1
      %p125 = por %p123, %p124
      %p126 = scmp.ne.s32.totalorder %s117, %s118
      %p127 = scmp.eq.s32.totalorder %s23, 0
      %p128 = por %p126, %p127
      %p129 = scmp.ne.s32.totalorder %s117, %s118
      %p130 = scmp.eq.s32.totalorder %s24, 1
      %p131 = por %p129, %p130
      %p133 = scmp.ne.s32.totalorder %s118, %s132
      %p134 = scmp.eq.s32.totalorder %s24, 0
      %p135 = por %p133, %p134
      %s136 = ssub.s32 %s18, %s25
      %p137 = scmp.eq.s32.totalorder %s136, 0
      %s139 = sadd.s32 %s138, 1
      %s140 = scalar_select %p137, %s138, %s139
      %p143 = pneg %p137
      %p144 = scmp.eq.s32.totalorder %s18, 1
      %p145 = por %p143, %p144
      %p146 = scmp.ne.s32.totalorder %s138, %s141
      %p147 = scmp.eq.s32.totalorder %s18, 0
      %p148 = por %p146, %p147
      %p149 = scmp.ne.s32.totalorder %s138, %s141
      %p150 = scmp.eq.s32.totalorder %s23, 1
      %p151 = por %p149, %p150
      %p152 = scmp.ne.s32.totalorder %s141, %s142
      %p153 = scmp.eq.s32.totalorder %s23, 0
      %p154 = por %p152, %p153
      %p155 = scmp.ne.s32.totalorder %s141, %s142
      %p156 = scmp.eq.s32.totalorder %s24, 1
      %p157 = por %p155, %p156
      %p159 = scmp.ne.s32.totalorder %s142, %s158
      %p160 = scmp.eq.s32.totalorder %s24, 0
      %p161 = por %p159, %p160
      %p162 = scmp.le.s32.totalorder 1, %s18
      %p163 = scmp.lt.s32.totalorder %s18, 3
      %p164 = pnand %p162, %p163
      %p165 = pneg %p164
      // Predicated region
      $region9: #{tpu_custom_call.1} parent=5 // pred_check
        _
      $region10: #{tpu_custom_call.1} parent=5 // pred_check_branch
        %167 = sbr.rel (%p164) target = $region12
      $region11: #{tpu_custom_call.1} parent=5 // pred_region
        %s168 = ssub.s32 %s18, 1
        // Predicated region
        $region13: #{tpu_custom_call.1} parent=11 // pred_check
          %p169 = pneg %p65
        $region14: #{tpu_custom_call.1} parent=11 // pred_check_branch
          %171 = sbr.rel (%p169) target = $region16
        $region15: #{tpu_custom_call.1} parent=11 // pred_region
          %s173 = ssub.s32 2048, 2048
          %174 = vsyncadd [#allocation6], %s173
          %s175 = sshll.u32 [#allocation5], 4
          %s176 = int_to_ptr.vmem [resolvable:$true] %s175
          %181 = dma.hbm_to_vmem [thread:$0]  %s1, 2048, %s176, [#allocation6], 128, 128, 8
        $region16: #{tpu_custom_call.1} parent=11 // pred_fallthru
          _
        // Predicated region
        $region17: #{tpu_custom_call.1} parent=11 // pred_check
          %p182 = pneg %p86
        $region18: #{tpu_custom_call.1} parent=11 // pred_check_branch
          %184 = sbr.rel (%p182) target = $region20
        $region19: #{tpu_custom_call.1} parent=11 // pred_region
          _
        $region20: #{tpu_custom_call.1} parent=11 // pred_fallthru
          _
        // Predicated region
        $region21: #{tpu_custom_call.1} parent=11 // pred_check
          %p185 = pneg %p107
        $region22: #{tpu_custom_call.1} parent=11 // pred_check_branch
          %187 = sbr.rel (%p185) target = $region24
        $region23: #{tpu_custom_call.1} parent=11 // pred_region
          _
        $region24: #{tpu_custom_call.1} parent=11 // pred_fallthru
          _
        // Predicated region
        $region25: #{tpu_custom_call.1} parent=11 // pred_check
          %p188 = pneg %p128
        $region26: #{tpu_custom_call.1} parent=11 // pred_check_branch
          %190 = sbr.rel (%p188) target = $region28
        $region27: #{tpu_custom_call.1} parent=11 // pred_region
          _
        $region28: #{tpu_custom_call.1} parent=11 // pred_fallthru
          _
      $region12: #{tpu_custom_call.1} parent=5 // pred_fallthru
        _
      %p191 = scmp.lt.s32.totalorder %s18, 2
      // Predicated region
      $region29: #{tpu_custom_call.1} parent=5 // pred_check
        %p192 = pneg %p191
      $region30: #{tpu_custom_call.1} parent=5 // pred_check_branch
        %194 = sbr.rel (%p192) target = $region32
      $region31: #{tpu_custom_call.1} parent=5 // pred_region
        // Predicated region
        $region33: #{tpu_custom_call.1} parent=31 // pred_check
          %p195 = pneg %p38
        $region34: #{tpu_custom_call.1} parent=31 // pred_check_branch
          %197 = sbr.rel (%p195) target = $region36
        $region35: #{tpu_custom_call.1} parent=31 // pred_region
          %s198 = sand.u32 %s28, 1
          %s199 = scalar_lea.sflag [#allocation3], %s198
          %s200 = sand.u32 %s28, 1
          %s201 = smul.addr %s200, 64
          %s202 = scalar_lea.vmem [#allocation2], %s201
          %s203 = smul.u32 16, %s18
          %s205 = ssub.s32 1024, 1024
          %206 = vsyncadd %s199, %s205
          %s207 = smul.addr %s203, 64
          %s208 = scalar_lea.hbm %s0, %s207
          %s209 = sshll.u32 %s202, 4
          %s210 = int_to_ptr.vmem [resolvable:$true] %s209
          %215 = dma.hbm_to_vmem [thread:$0]  %s208, 1024, %s210, %s199, 64, 64, 4
        $region36: #{tpu_custom_call.1} parent=31 // pred_fallthru
          _
      $region32: #{tpu_custom_call.1} parent=5 // pred_fallthru
        _
      %p216 = scmp.le.s32.totalorder 1, %s18
      %p217 = scmp.lt.s32.totalorder %s18, 3
      %p218 = pnand %p216, %p217
      %p219 = pneg %p218
      // Predicated region
      $region37: #{tpu_custom_call.1} parent=5 // pred_check
        _
      $region38: #{tpu_custom_call.1} parent=5 // pred_check_branch
        %221 = sbr.rel (%p218) target = $region40
      $region39: #{tpu_custom_call.1} parent=5 // pred_region
        %s222 = ssub.s32 %s18, 1
        %s223 = sand.u32 %s31, 1
        %s224 = scalar_lea.sflag [#allocation3], %s223
        %s225 = sand.u32 %s31, 1
        %s226 = smul.addr %s225, 64
        %s227 = scalar_lea.vmem [#allocation2], %s226
        // Predicated region
        $region41: #{tpu_custom_call.1} parent=39 // pred_check
          %p228 = pneg %p44
        $region42: #{tpu_custom_call.1} parent=39 // pred_check_branch
          %230 = sbr.rel (%p228) target = $region44
        $region43: #{tpu_custom_call.1} parent=39 // pred_region
          %231 = dma.done %s224, 1024
        $region44: #{tpu_custom_call.1} parent=39 // pred_fallthru
          _
        // Predicated region
        $region45: #{tpu_custom_call.1} parent=39 // pred_check
          %p232 = pneg %p65
        $region46: #{tpu_custom_call.1} parent=39 // pred_check_branch
          %234 = sbr.rel (%p232) target = $region48
        $region47: #{tpu_custom_call.1} parent=39 // pred_region
          %235 = dma.done [#allocation6], 2048
        $region48: #{tpu_custom_call.1} parent=39 // pred_fallthru
          _
        %s236 = sand.u32 %s31, 1
        %s237 = scalar_lea.sflag [#allocation3], %s236
        %s238 = sand.u32 %s31, 1
        %s239 = smul.addr %s238, 64
        %s240 = scalar_lea.vmem [#allocation2], %s239
        %p241 = pneg %p44
        %p242 = pneg %p41
        %p243 = pneg %p65
        %p244 = pneg %p62
        %p245 = pneg %p86
        %p246 = pneg %p83
        %p247 = pneg %p107
        %p248 = pneg %p104
        %p249 = pneg %p128
        %p250 = pneg %p125
        %p251 = pneg %p154
        %p252 = pneg %p151
        %s253 = sand.u32 %s141, 1
        %s254 = scalar_lea.sflag [#allocation4], %s253
        %s255 = sand.u32 %s141, 1
        %s256 = smul.addr %s255, 128
        %s257 = scalar_lea.vmem [#allocation7], %s256
        %s258 = smul.u32 16, %s23
        %s259 = smul.u32 16, %s23
        %v261 = vld [vmem:[%s227] sm:$0xf]
        %v262 = vld [vmem:[%s227 + $0x4] sm:$0xf]
        %v263 = vld [vmem:[%s227 + $0x8] sm:$0xf]
        %v264 = vld [vmem:[%s227 + $0xc] sm:$0xf]
        %v265 = vld [vmem:[%s227 + $0x10] sm:$0xf]
        %v266 = vld [vmem:[%s227 + $0x14] sm:$0xf]
        %v267 = vld [vmem:[%s227 + $0x18] sm:$0xf]
        %v268 = vld [vmem:[%s227 + $0x1c] sm:$0xf]
        %v269 = vld [vmem:[%s227 + $0x20] sm:$0xf]
        %v270 = vld [vmem:[%s227 + $0x24] sm:$0xf]
        %v271 = vld [vmem:[%s227 + $0x28] sm:$0xf]
        %v272 = vld [vmem:[%s227 + $0x2c] sm:$0xf]
        %v273 = vld [vmem:[%s227 + $0x30] sm:$0xf]
        %v274 = vld [vmem:[%s227 + $0x34] sm:$0xf]
        %v275 = vld [vmem:[%s227 + $0x38] sm:$0xf]
        %v276 = vld [vmem:[%s227 + $0x3c] sm:$0xf]
        %v277 = vunpack.c.l.bf16 %v261
        %v278 = vunpack.c.l.bf16 %v262
        %v279 = vunpack.c.l.bf16 %v263
        %v280 = vunpack.c.l.bf16 %v264
        %v281 = vunpack.c.l.bf16 %v265
        %v282 = vunpack.c.l.bf16 %v266
        %v283 = vunpack.c.l.bf16 %v267
        %v284 = vunpack.c.l.bf16 %v268
        %v285 = vunpack.c.l.bf16 %v269
        %v286 = vunpack.c.l.bf16 %v270
        %v287 = vunpack.c.l.bf16 %v271
        %v288 = vunpack.c.l.bf16 %v272
        %v289 = vunpack.c.l.bf16 %v273
        %v290 = vunpack.c.l.bf16 %v274
        %v291 = vunpack.c.l.bf16 %v275
        %v292 = vunpack.c.l.bf16 %v276
        %v293 = vld [vmem:[%s2] sm:$0x1]
        %v295 = vlaneseq
        %v296 = vshrl.u32 %v295, 7
        %v297 = vsub.s32 0, %v296
        %v298 = vrot.slane %v293, %v297
        %v300 = vmul.f32 %v277, %v298
        %v301 = vmul.f32 %v278, %v298
        %v302 = vmul.f32 %v279, %v298
        %v303 = vmul.f32 %v280, %v298
        %v304 = vmul.f32 %v281, %v298
        %v305 = vmul.f32 %v282, %v298
        %v306 = vmul.f32 %v283, %v298
        %v307 = vmul.f32 %v284, %v298
        %v308 = vmul.f32 %v285, %v298
        %v309 = vmul.f32 %v286, %v298
        %v310 = vmul.f32 %v287, %v298
        %v311 = vmul.f32 %v288, %v298
        %v312 = vmul.f32 %v289, %v298
        %v313 = vmul.f32 %v290, %v298
        %v314 = vmul.f32 %v291, %v298
        %v315 = vmul.f32 %v292, %v298
        %v316 = vld [vmem:[%s3] sm:$0x1]
        %v318 = vlaneseq
        %v319 = vshrl.u32 %v318, 7
        %v320 = vsub.s32 0, %v319
        %v321 = vrot.slane %v316, %v320
        %v323 = vadd.f32 %v300, %v321
        %v324 = vadd.f32 %v301, %v321
        %v325 = vadd.f32 %v302, %v321
        %v326 = vadd.f32 %v303, %v321
        %v327 = vadd.f32 %v304, %v321
        %v328 = vadd.f32 %v305, %v321
        %v329 = vadd.f32 %v306, %v321
        %v330 = vadd.f32 %v307, %v321
        %v331 = vadd.f32 %v308, %v321
        %v332 = vadd.f32 %v309, %v321
        %v333 = vadd.f32 %v310, %v321
        %v334 = vadd.f32 %v311, %v321
        %v335 = vadd.f32 %v312, %v321
        %v336 = vadd.f32 %v313, %v321
        %v337 = vadd.f32 %v314, %v321
        %v338 = vadd.f32 %v315, %v321
        %v339 = vmax.f32 %v323, 0.0
        %v340 = vmax.f32 %v324, 0.0
        %v341 = vmax.f32 %v325, 0.0
        %v342 = vmax.f32 %v326, 0.0
        %v343 = vmax.f32 %v327, 0.0
        %v344 = vmax.f32 %v328, 0.0
        %v345 = vmax.f32 %v329, 0.0
        %v346 = vmax.f32 %v330, 0.0
        %v347 = vmax.f32 %v331, 0.0
        %v348 = vmax.f32 %v332, 0.0
        %v349 = vmax.f32 %v333, 0.0
        %v350 = vmax.f32 %v334, 0.0
        %v351 = vmax.f32 %v335, 0.0
        %v352 = vmax.f32 %v336, 0.0
        %v353 = vmax.f32 %v337, 0.0
        %v354 = vmax.f32 %v338, 0.0
        %v355 = vpack.c.bf16 %v340, %v339
        %v356 = vpack.c.bf16 %v342, %v341
        %v357 = vpack.c.bf16 %v344, %v343
        %v358 = vpack.c.bf16 %v346, %v345
        %v359 = vpack.c.bf16 %v348, %v347
        %v360 = vpack.c.bf16 %v350, %v349
        %v361 = vpack.c.bf16 %v352, %v351
        %v362 = vpack.c.bf16 %v354, %v353
        %v363 = vld [vmem:[#allocation5] sm:$0xff]
        %v364 = vld [vmem:[#allocation5 + $0x8] sm:$0xff]
        %v365 = vld [vmem:[#allocation5 + $0x10] sm:$0xff]
        %v366 = vld [vmem:[#allocation5 + $0x18] sm:$0xff]
        %v367 = vld [vmem:[#allocation5 + $0x20] sm:$0xff]
        %v368 = vld [vmem:[#allocation5 + $0x28] sm:$0xff]
        %v369 = vld [vmem:[#allocation5 + $0x30] sm:$0xff]
        %v370 = vld [vmem:[#allocation5 + $0x38] sm:$0xff]
        %v371 = vld [vmem:[#allocation5 + $0x40] sm:$0xff]
        %v372 = vld [vmem:[#allocation5 + $0x48] sm:$0xff]
        %v373 = vld [vmem:[#allocation5 + $0x50] sm:$0xff]
        %v374 = vld [vmem:[#allocation5 + $0x58] sm:$0xff]
        %v375 = vld [vmem:[#allocation5 + $0x60] sm:$0xff]
        %v376 = vld [vmem:[#allocation5 + $0x68] sm:$0xff]
        %v377 = vld [vmem:[#allocation5 + $0x70] sm:$0xff]
        %v378 = vld [vmem:[#allocation5 + $0x78] sm:$0xff]
        %v379 = vld [vmem:[%s4] sm:$0x3]
        %v381 = vlaneseq
        %v382 = vshrl.u32 %v381, 7
        %v383 = vsub.s32 0, %v382
        %v384 = vrot.slane %v379, %v383
        %v385 = vlaneseq
        %v386 = vshrl.u32 %v385, 7
        %v387 = vsub.s32 1, %v386
        %v388 = vrot.slane %v379, %v387
        %v407 = vunpack.c.l.b16 %v363
        %v408 = vunpack.c.h.b16 %v363
        %v409 = vunpack.c.l.b16 %v364
        %v410 = vunpack.c.h.b16 %v364
        %v411 = vunpack.c.l.b16 %v365
        %v412 = vunpack.c.h.b16 %v365
        %v413 = vunpack.c.l.b16 %v366
        %v414 = vunpack.c.h.b16 %v366
        %v415 = vunpack.c.l.b16 %v367
        %v416 = vunpack.c.h.b16 %v367
        %v417 = vunpack.c.l.b16 %v368
        %v418 = vunpack.c.h.b16 %v368
        %v419 = vunpack.c.l.b16 %v369
        %v420 = vunpack.c.h.b16 %v369
        %v421 = vunpack.c.l.b16 %v370
        %v422 = vunpack.c.h.b16 %v370
        %v423 = vunpack.c.l.b16 %v371
        %v424 = vunpack.c.h.b16 %v371
        %v425 = vunpack.c.l.b16 %v372
        %v426 = vunpack.c.h.b16 %v372
        %v427 = vunpack.c.l.b16 %v373
        %v428 = vunpack.c.h.b16 %v373
        %v429 = vunpack.c.l.b16 %v374
        %v430 = vunpack.c.h.b16 %v374
        %v431 = vunpack.c.l.b16 %v375
        %v432 = vunpack.c.h.b16 %v375
        %v433 = vunpack.c.l.b16 %v376
        %v434 = vunpack.c.h.b16 %v376
        %v435 = vunpack.c.l.b16 %v377
        %v436 = vunpack.c.h.b16 %v377
        %v437 = vunpack.c.l.b16 %v378
        %v438 = vunpack.c.h.b16 %v378
        %v439 = vpack.c.b16 %v409, %v407
        %v440 = vpack.c.b16 %v410, %v408
        %v441 = vpack.c.b16 %v413, %v411
        %v442 = vpack.c.b16 %v414, %v412
        %v443 = vpack.c.b16 %v417, %v415
        %v444 = vpack.c.b16 %v418, %v416
        %v445 = vpack.c.b16 %v421, %v419
        %v446 = vpack.c.b16 %v422, %v420
        %v447 = vpack.c.b16 %v425, %v423
        %v448 = vpack.c.b16 %v426, %v424
        %v449 = vpack.c.b16 %v429, %v427
        %v450 = vpack.c.b16 %v430, %v428
        %v451 = vpack.c.b16 %v433, %v431
        %v452 = vpack.c.b16 %v434, %v432
        %v453 = vpack.c.b16 %v437, %v435
        %v454 = vpack.c.b16 %v438, %v436
        %471 = vmatprep.subr.bf16.mxu0 %v440
        %472 = vmatpush1.bf16.msra.mxu0 %v439
        %473 = vmatprep.subr.bf16.mxu0 %v442
        %474 = vmatpush1.bf16.msra.mxu0 %v441
        %475 = vmatprep.subr.bf16.mxu0 %v444
        %476 = vmatpush1.bf16.msra.mxu0 %v443
        %477 = vmatprep.subr.bf16.mxu0 %v446
        %478 = vmatpush1.bf16.msra.mxu0 %v445
        %479 = vmatprep.subr.bf16.mxu0 %v448
        %480 = vmatpush1.bf16.msra.mxu0 %v447
        %481 = vmatprep.subr.bf16.mxu0 %v450
        %482 = vmatpush1.bf16.msra.mxu0 %v449
        %483 = vmatprep.subr.bf16.mxu0 %v452
        %484 = vmatpush1.bf16.msra.mxu0 %v451
        %485 = vmatprep.subr.bf16.mxu0 %v454
        %486 = vmatpush1.bf16.msra.mxu0 %v453
        %487 = vmatprep.subr.bf16.mxu0 0
        %488 = vmatpush1.bf16.msra.mxu0 0
        %489 = vmatprep.subr.bf16.mxu0 0
        %490 = vmatpush1.bf16.msra.mxu0 0
        %491 = vmatprep.subr.bf16.mxu0 0
        %492 = vmatpush1.bf16.msra.mxu0 0
        %493 = vmatprep.subr.bf16.mxu0 0
        %494 = vmatpush1.bf16.msra.mxu0 0
        %495 = vmatprep.subr.bf16.mxu0 0
        %496 = vmatpush1.bf16.msra.mxu0 0
        %497 = vmatprep.subr.bf16.mxu0 0
        %498 = vmatpush1.bf16.msra.mxu0 0
        %499 = vmatprep.subr.bf16.mxu0 0
        %500 = vmatpush1.bf16.msra.mxu0 0
        %501 = vmatprep.subr.bf16.mxu0 0
        %502 = vmatpush1.bf16.msra.mxu0 0
        %503 = vmatprep.mubr.bf16.mxu0 0
        %504 = vmatmul.mubr.bf16.gmra.mrb[0].mxu0 %v355
        %v505 = vpop.f32.mrb[0].mxu0
        %v506 = vadd.f32 %v384, %v505
        %v507 = vpop.f32.mrb[0].mxu0
        %v508 = vadd.f32 %v388, %v507
        %v509 = vpop.f32.mrb[0].mxu0
        %v510 = vadd.f32 %v384, %v509
        %v511 = vpop.f32.mrb[0].mxu0
        %v512 = vadd.f32 %v388, %v511
        %513 = vmatprep.mubr.bf16.mxu0 0
        %514 = vmatmul.mubr.bf16.gmra.mrb[0].mxu0 %v356
        %v515 = vpop.f32.mrb[0].mxu0
        %v516 = vadd.f32 %v384, %v515
        %v517 = vpop.f32.mrb[0].mxu0
        %v518 = vadd.f32 %v388, %v517
        %v519 = vpop.f32.mrb[0].mxu0
        %v520 = vadd.f32 %v384, %v519
        %v521 = vpop.f32.mrb[0].mxu0
        %v522 = vadd.f32 %v388, %v521
        %523 = vmatprep.mubr.bf16.mxu0 0
        %524 = vmatmul.mubr.bf16.gmra.mrb[0].mxu0 %v357
        %v525 = vpop.f32.mrb[0].mxu0
        %v526 = vadd.f32 %v384, %v525
        %v527 = vpop.f32.mrb[0].mxu0
        %v528 = vadd.f32 %v388, %v527
        %v529 = vpop.f32.mrb[0].mxu0
        %v530 = vadd.f32 %v384, %v529
        %v531 = vpop.f32.mrb[0].mxu0
        %v532 = vadd.f32 %v388, %v531
        %533 = vmatprep.mubr.bf16.mxu0 0
        %534 = vmatmul.mubr.bf16.gmra.mrb[0].mxu0 %v358
        %v535 = vpop.f32.mrb[0].mxu0
        %v536 = vadd.f32 %v384, %v535
        %v537 = vpop.f32.mrb[0].mxu0
        %v538 = vadd.f32 %v388, %v537
        %v539 = vpop.f32.mrb[0].mxu0
        %v540 = vadd.f32 %v384, %v539
        %v541 = vpop.f32.mrb[0].mxu0
        %v542 = vadd.f32 %v388, %v541
        %543 = vmatprep.mubr.bf16.mxu0 0
        %544 = vmatmul.mubr.bf16.gmra.mrb[0].mxu0 %v359
        %v545 = vpop.f32.mrb[0].mxu0
        %v546 = vadd.f32 %v384, %v545
        %v547 = vpop.f32.mrb[0].mxu0
        %v548 = vadd.f32 %v388, %v547
        %v549 = vpop.f32.mrb[0].mxu0
        %v550 = vadd.f32 %v384, %v549
        %v551 = vpop.f32.mrb[0].mxu0
        %v552 = vadd.f32 %v388, %v551
        %553 = vmatprep.mubr.bf16.mxu0 0
        %554 = vmatmul.mubr.bf16.gmra.mrb[0].mxu0 %v360
        %v555 = vpop.f32.mrb[0].mxu0
        %v556 = vadd.f32 %v384, %v555
        %v557 = vpop.f32.mrb[0].mxu0
        %v558 = vadd.f32 %v388, %v557
        %v559 = vpop.f32.mrb[0].mxu0
        %v560 = vadd.f32 %v384, %v559
        %v561 = vpop.f32.mrb[0].mxu0
        %v562 = vadd.f32 %v388, %v561
        %563 = vmatprep.mubr.bf16.mxu0 0
        %564 = vmatmul.mubr.bf16.gmra.mrb[0].mxu0 %v361
        %v565 = vpop.f32.mrb[0].mxu0
        %v566 = vadd.f32 %v384, %v565
        %v567 = vpop.f32.mrb[0].mxu0
        %v568 = vadd.f32 %v388, %v567
        %v569 = vpop.f32.mrb[0].mxu0
        %v570 = vadd.f32 %v384, %v569
        %v571 = vpop.f32.mrb[0].mxu0
        %v572 = vadd.f32 %v388, %v571
        %573 = vmatprep.mubr.bf16.mxu0 0
        %574 = vmatmul.mubr.bf16.gmra.mrb[0].mxu0 %v362
        %v575 = vpop.f32.mrb[0].mxu0
        %v576 = vadd.f32 %v384, %v575
        %v577 = vpop.f32.mrb[0].mxu0
        %v578 = vadd.f32 %v388, %v577
        %v579 = vpop.f32.mrb[0].mxu0
        %v580 = vadd.f32 %v384, %v579
        %v581 = vpop.f32.mrb[0].mxu0
        %v582 = vadd.f32 %v388, %v581
        %583 = vdwg.mxu0
        %v584 = vpack.c.bf16 %v510, %v506
        %v585 = vpack.c.bf16 %v512, %v508
        %v586 = vpack.c.bf16 %v520, %v516
        %v587 = vpack.c.bf16 %v522, %v518
        %v588 = vpack.c.bf16 %v530, %v526
        %v589 = vpack.c.bf16 %v532, %v528
        %v590 = vpack.c.bf16 %v540, %v536
        %v591 = vpack.c.bf16 %v542, %v538
        %v592 = vpack.c.bf16 %v550, %v546
        %v593 = vpack.c.bf16 %v552, %v548
        %v594 = vpack.c.bf16 %v560, %v556
        %v595 = vpack.c.bf16 %v562, %v558
        %v596 = vpack.c.bf16 %v570, %v566
        %v597 = vpack.c.bf16 %v572, %v568
        %v598 = vpack.c.bf16 %v580, %v576
        %v599 = vpack.c.bf16 %v582, %v578
        %v616 = vunpack.c.l.b16 %v584
        %v617 = vunpack.c.l.b16 %v585
        %v618 = vunpack.c.h.b16 %v584
        %v619 = vunpack.c.h.b16 %v585
        %v620 = vunpack.c.l.b16 %v586
        %v621 = vunpack.c.l.b16 %v587
        %v622 = vunpack.c.h.b16 %v586
        %v623 = vunpack.c.h.b16 %v587
        %v624 = vunpack.c.l.b16 %v588
        %v625 = vunpack.c.l.b16 %v589
        %v626 = vunpack.c.h.b16 %v588
        %v627 = vunpack.c.h.b16 %v589
        %v628 = vunpack.c.l.b16 %v590
        %v629 = vunpack.c.l.b16 %v591
        %v630 = vunpack.c.h.b16 %v590
        %v631 = vunpack.c.h.b16 %v591
        %v632 = vunpack.c.l.b16 %v592
        %v633 = vunpack.c.l.b16 %v593
        %v634 = vunpack.c.h.b16 %v592
        %v635 = vunpack.c.h.b16 %v593
        %v636 = vunpack.c.l.b16 %v594
        %v637 = vunpack.c.l.b16 %v595
        %v638 = vunpack.c.h.b16 %v594
        %v639 = vunpack.c.h.b16 %v595
        %v640 = vunpack.c.l.b16 %v596
        %v641 = vunpack.c.l.b16 %v597
        %v642 = vunpack.c.h.b16 %v596
        %v643 = vunpack.c.h.b16 %v597
        %v644 = vunpack.c.l.b16 %v598
        %v645 = vunpack.c.l.b16 %v599
        %v646 = vunpack.c.h.b16 %v598
        %v647 = vunpack.c.h.b16 %v599
        %v648 = vpack.c.b16 %v617, %v616
        %v649 = vpack.c.b16 %v619, %v618
        %v650 = vpack.c.b16 %v621, %v620
        %v651 = vpack.c.b16 %v623, %v622
        %v652 = vpack.c.b16 %v625, %v624
        %v653 = vpack.c.b16 %v627, %v626
        %v654 = vpack.c.b16 %v629, %v628
        %v655 = vpack.c.b16 %v631, %v630
        %v656 = vpack.c.b16 %v633, %v632
        %v657 = vpack.c.b16 %v635, %v634
        %v658 = vpack.c.b16 %v637, %v636
        %v659 = vpack.c.b16 %v639, %v638
        %v660 = vpack.c.b16 %v641, %v640
        %v661 = vpack.c.b16 %v643, %v642
        %v662 = vpack.c.b16 %v645, %v644
        %v663 = vpack.c.b16 %v647, %v646
        %680 = vst [vmem:[%s257] sm:$0xff] %v648
        %681 = vst [vmem:[%s257 + $0x8] sm:$0xff] %v649
        %682 = vst [vmem:[%s257 + $0x10] sm:$0xff] %v650
        %683 = vst [vmem:[%s257 + $0x18] sm:$0xff] %v651
        %684 = vst [vmem:[%s257 + $0x20] sm:$0xff] %v652
        %685 = vst [vmem:[%s257 + $0x28] sm:$0xff] %v653
        %686 = vst [vmem:[%s257 + $0x30] sm:$0xff] %v654
        %687 = vst [vmem:[%s257 + $0x38] sm:$0xff] %v655
        %688 = vst [vmem:[%s257 + $0x40] sm:$0xff] %v656
        %689 = vst [vmem:[%s257 + $0x48] sm:$0xff] %v657
        %690 = vst [vmem:[%s257 + $0x50] sm:$0xff] %v658
        %691 = vst [vmem:[%s257 + $0x58] sm:$0xff] %v659
        %692 = vst [vmem:[%s257 + $0x60] sm:$0xff] %v660
        %693 = vst [vmem:[%s257 + $0x68] sm:$0xff] %v661
        %694 = vst [vmem:[%s257 + $0x70] sm:$0xff] %v662
        %695 = vst [vmem:[%s257 + $0x78] sm:$0xff] %v663
        %s696 = sand.u32 %s141, 1
        %s697 = scalar_lea.sflag [#allocation4], %s696
        %s698 = sand.u32 %s141, 1
        %s699 = smul.addr %s698, 128
        %s700 = scalar_lea.vmem [#allocation7], %s699
        // Predicated region
        $region49: #{tpu_custom_call.1} parent=39 // pred_check
          %p701 = pneg %p151
        $region50: #{tpu_custom_call.1} parent=39 // pred_check_branch
          %703 = sbr.rel (%p701) target = $region52
        $region51: #{tpu_custom_call.1} parent=39 // pred_region
          %s704 = smul.u32 16, %s23
          %s706 = ssub.s32 2048, 2048
          %707 = vsyncadd %s697, %s706
          %s708 = smul.addr %s704, 2
          %s709 = smul.addr %s708, 64
          %s710 = scalar_lea.hbm %s5, %s709
          %s711 = sshll.u32 %s700, 4
          %s712 = int_to_ptr.vmem [resolvable:$true] %s711
          %717 = dma.vmem_to_hbm [thread:$0]  %s712, 2048, %s710, %s697, 128, 128, 8
        $region52: #{tpu_custom_call.1} parent=39 // pred_fallthru
          _
      $region40: #{tpu_custom_call.1} parent=5 // pred_fallthru
        _
      %p718 = scmp.le.s32.totalorder 2, %s18
      // Predicated region
      $region53: #{tpu_custom_call.1} parent=5 // pred_check
        %p719 = pneg %p718
      $region54: #{tpu_custom_call.1} parent=5 // pred_check_branch
        %721 = sbr.rel (%p719) target = $region56
      $region55: #{tpu_custom_call.1} parent=5 // pred_region
        %s722 = ssub.s32 %s18, 2
        // Predicated region
        $region57: #{tpu_custom_call.1} parent=55 // pred_check
          %p723 = pneg %p157
        $region58: #{tpu_custom_call.1} parent=55 // pred_check_branch
          %725 = sbr.rel (%p723) target = $region60
        $region59: #{tpu_custom_call.1} parent=55 // pred_region
          %s726 = sand.u32 %s142, 1
          %s727 = scalar_lea.sflag [#allocation4], %s726
          %s728 = sand.u32 %s142, 1
          %s729 = smul.addr %s728, 128
          %s730 = scalar_lea.vmem [#allocation7], %s729
          %731 = dma.done %s727, 2048
        $region60: #{tpu_custom_call.1} parent=55 // pred_fallthru
          _
      $region56: #{tpu_custom_call.1} parent=5 // pred_fallthru
        _
    $region6: #{tpu_custom_call.1} parent=1 // loop_footer
      %s22 = sadd.s32 1, %s18
    $region7: #{tpu_custom_call.1} parent=1 // loop_footer_branch
      %17 = sbr.rel target = $region3
    $region8: #{tpu_custom_call.1} parent=1 // loop_exit
      _
    %732 = vsyncpa [#allocation3], 1
    %s733 = scalar_lea.sflag [#allocation3], 1
    %734 = vsyncpa %s733, 1
    %735 = vsyncpa [#allocation6], 1
    %736 = vsyncpa [#allocation4], 1
    %s737 = scalar_lea.sflag [#allocation4], 1
    %738 = vsyncpa %s737, 1

</llo_original>
